<compile_context>
chip_gen: v7x
topology: tpu7x:2x2x1
jax: 0.10.0
libtpu: 0.0.40
codegen_flags: <defaults>
</compile_context>

<pallas_src>
import jax
import jax.numpy as jnp
from jax.experimental import pallas as pl
from jax.experimental.pallas import tpu as pltpu

_SUBLANE = 8      # sublane granularity for the batch tile
_MAX_TB = 2048    # max batch tile (tiny VMEM footprint even double-buffered)


def _policy_kernel(x_ref, w1_ref, b1_ref, wd_ref, bd_ref, out_ref):
    # ---- Layer 1 on the MXU: (TB, 4) @ (4, H) + (1, H), ReLU.
    h = jnp.dot(x_ref[...], w1_ref[...],
                preferred_element_type=jnp.float32,
                precision=jax.lax.Precision.HIGHEST)
    h = jnp.maximum(h + b1_ref[...], 0.0)                     # (TB, H) f32

    # ---- Layer 2 + 2-class softmax: softmax(l0, l1)[0] == sigmoid(l0 - l1).
    # w_diff is (H, 1) so this is another MXU matmul; b_diff is an SMEM scalar.
    ldiff = jnp.dot(h, wd_ref[...],
                    preferred_element_type=jnp.float32,
                    precision=jax.lax.Precision.HIGHEST) + bd_ref[0, 0]   # (TB, 1)

    # Stable sigmoid split: e = exp(-|ldiff|) in (0,1] -> no overflow, and the minority
    # probability keeps relative precision (p_small = e/(1+e) instead of 1 - p_big).
    e = jnp.exp(-jnp.abs(ldiff))                               # EUP
    inv = 1.0 / (1.0 + e)
    p_big = inv
    p_small = e * inv
    pos = ldiff >= 0.0
    p0 = jnp.where(pos, p_big, p_small)
    p1 = jnp.where(pos, p_small, p_big)

    # ---- Narrow (TB, 2) output block: select into the two lanes and store once.
    col = jax.lax.broadcasted_iota(jnp.int32, out_ref.shape, dimension=1)
    out_ref[...] = jnp.where(col == 0, p0, p1).astype(out_ref.dtype)


def _round_up(n, m):
    return ((n + m - 1) // m) * m


def nn_policy_forward(x, w1, b1, w2, b2, *, max_batch_tile=_MAX_TB):
    """Forward pass of NNPolicy.

    Args:
        x:  (B, 4)   float32 states
        w1: (4, H)   float32   (in_features x out_features, i.e. torch l1.weight.T)
        b1: (1, H)   float32
        w2: (H, 2)   float32   (torch l2.weight.T)
        b2: (1, 2)   float32
    Returns:
        (B, 2) float32 action probabilities (rows sum to 1).
    """
    B, obs_dim = x.shape
    H, A = w2.shape
    assert A == 2, "NNPolicy has exactly 2 actions"
    assert w1.shape == (obs_dim, H)

    # Balanced batch tiles: TB = round_up(cdiv(B, n_tiles), 8), capped at max_batch_tile.
    max_tb = max(_SUBLANE, (max_batch_tile // _SUBLANE) * _SUBLANE)
    n_tiles = pl.cdiv(B, max_tb)
    TB = _round_up(pl.cdiv(B, n_tiles), _SUBLANE)
    B_pad = _round_up(B, TB)
    if B_pad != B:
        x = jnp.pad(x, ((0, B_pad - B), (0, 0)))
    n_tiles = B_pad // TB

    # Precompute the layer-2 weight/bias differences in the wrapper.
    w_diff = w2[:, 0:1] - w2[:, 1:2]                     # (H, 1) -> MXU rhs
    b_diff = (b2[:, 0:1] - b2[:, 1:2]).reshape(1, 1)     # (1, 1) -> SMEM scalar

    out = pl.pallas_call(
        _policy_kernel,
        out_shape=jax.ShapeDtypeStruct((B_pad, A), jnp.float32),
        grid_spec=pltpu.PrefetchScalarGridSpec(
            num_scalar_prefetch=0,
            grid=(n_tiles,),
            in_specs=[
                pl.BlockSpec((TB, obs_dim), lambda i: (i, 0)),   # x: tiled on batch
                pl.BlockSpec((obs_dim, H), lambda i: (0, 0)),    # w1: VMEM-resident
                pl.BlockSpec((1, H), lambda i: (0, 0)),          # b1: VMEM-resident
                pl.BlockSpec((H, 1), lambda i: (0, 0)),          # w_diff: VMEM-resident
                pl.BlockSpec(memory_space=pltpu.MemorySpace.SMEM),  # b_diff scalar
            ],
            out_specs=pl.BlockSpec((TB, A), lambda i: (i, 0)),
        ),
        compiler_params=pltpu.CompilerParams(
            # TODO(synk): on v7x, verify both TensorCores are active; if one TC is idle in
            # the trace, switch this axis to pltpu.CORE_PARALLEL / an explicit core split.
            dimension_semantics=("parallel",),
        ),
    )(x, w1, b1, w_diff, b_diff)

    # Slice off the batch padding only (output is already action-narrow).
    return out[:B]


def init_params(key, obs_dim=4, num_hidden=128, num_actions=2):
    """Deterministic init mimicking torch.nn.Linear default U(-1/sqrt(fan_in), 1/sqrt(fan_in))."""
    k1, k2, k3, k4 = jax.random.split(key, 4)
    bound1 = 1.0 / jnp.sqrt(obs_dim)
    bound2 = 1.0 / jnp.sqrt(num_hidden)
    w1 = jax.random.uniform(k1, (obs_dim, num_hidden), jnp.float32, -bound1, bound1)
    b1 = jax.random.uniform(k2, (1, num_hidden), jnp.float32, -bound1, bound1)
    w2 = jax.random.uniform(k3, (num_hidden, num_actions), jnp.float32, -bound2, bound2)
    b2 = jax.random.uniform(k4, (1, num_actions), jnp.float32, -bound2, bound2)
    return w1, b1, w2, b2


def _reference(x, w1, b1, w2, b2):
    hp = jax.lax.Precision.HIGHEST
    h = jnp.maximum(jnp.dot(x, w1, precision=hp) + b1, 0.0)
    return jax.nn.softmax(jnp.dot(h, w2, precision=hp) + b2, axis=1)


if __name__ == "__main__":
    key = jax.random.PRNGKey(0)
    k_params, k_x1, k_x2 = jax.random.split(key, 3)

    OBS, HID, ACT = 4, 128, 2
    w1, b1, w2, b2 = init_params(k_params, OBS, HID, ACT)

    # Small single-tile batch.
    B1 = 8
    x1 = jax.random.normal(k_x1, (B1, OBS), jnp.float32)
    probs1 = jax.block_until_ready(nn_policy_forward(x1, w1, b1, w2, b2))
    ref1 = _reference(x1, w1, b1, w2, b2)
    assert probs1.shape == (B1, ACT)
    assert jnp.allclose(probs1, ref1, atol=1e-5), "mismatch vs reference (single tile)"
    assert jnp.allclose(jnp.sum(probs1, axis=1), 1.0, atol=1e-5)

    # Non-multiple batch, multiple grid steps (exercises padding + balanced tiling +
    # resident-weight pipeline): B=300, max tile 128 -> 3 tiles of 104 rows.
    B2 = 300
    x2 = jax.random.normal(k_x2, (B2, OBS), jnp.float32)
    probs2 = jax.block_until_ready(nn_policy_forward(x2, w1, b1, w2, b2, max_batch_tile=128))
    ref2 = _reference(x2, w1, b1, w2, b2)
    assert probs2.shape == (B2, ACT)
    assert jnp.allclose(probs2, ref2, atol=1e-5), "mismatch vs reference (tiled)"
    assert jnp.allclose(jnp.sum(probs2, axis=1), 1.0, atol=1e-5)

    # TODO(synk): get_probs (gather) and sample_action (multinomial) are host-side policy
    # utilities, not part of the forward pass, and are intentionally not kernelized.
    print("KERNEL_OK")
</pallas_src>

<mosaic_0001>
module attributes {stable_mosaic.version = 11 : i64} {
  func.func @_policy_kernel(%arg0: i32, %arg1: memref<8x4xf32, #tpu.memory_space<vmem>>, %arg2: memref<4x128xf32, #tpu.memory_space<vmem>>, %arg3: memref<1x128xf32, #tpu.memory_space<vmem>>, %arg4: memref<128x1xf32, #tpu.memory_space<vmem>>, %arg5: memref<1x1xf32, #tpu.memory_space<smem>>, %arg6: memref<8x2xf32, #tpu.memory_space<vmem>>) attributes {dimension_semantics = [#tpu.dimension_semantics<parallel>], iteration_bounds = array<i64: 1>, scalar_prefetch = 0 : i64, scratch_operands = 0 : i64, tpu.core_type = #tpu.core_type<tc>, window_params = [{transform_indices = @transform_0, window_bounds = array<i64: 8, 4>}, {pipeline_mode = #tpu.pipeline_mode<synchronous>, transform_indices = @transform_1, window_bounds = array<i64: 4, 128>}, {pipeline_mode = #tpu.pipeline_mode<synchronous>, transform_indices = @transform_2, window_bounds = array<i64: 1, 128>}, {pipeline_mode = #tpu.pipeline_mode<synchronous>, transform_indices = @transform_3, window_bounds = array<i64: 128, 1>}, {transform_indices = @transform_4, window_bounds = array<i64: 1, 1>}, {transform_indices = @transform_5, window_bounds = array<i64: 8, 2>}]} {
    %c0 = arith.constant 0 : index
    %c0_0 = arith.constant 0 : index
    %0 = vector.load %arg1[%c0, %c0_0] : memref<8x4xf32, #tpu.memory_space<vmem>>, vector<8x4xf32>
    %c0_1 = arith.constant 0 : index
    %c0_2 = arith.constant 0 : index
    %1 = vector.load %arg2[%c0_1, %c0_2] : memref<4x128xf32, #tpu.memory_space<vmem>>, vector<4x128xf32>
    %cst = arith.constant dense<0.000000e+00> : vector<8x128xf32>
    %2 = tpu.matmul %0, %1, %cst {dimension_numbers = #tpu.dot_dimension_numbers<[1], [0], [0], [1], [0, 0, 1, 1], [], []>, precision = #tpu.contract_precision<fp32>} : vector<8x4xf32>, vector<4x128xf32>, vector<8x128xf32> -> vector<8x128xf32>
    %c0_3 = arith.constant 0 : index
    %c0_4 = arith.constant 0 : index
    %3 = vector.load %arg3[%c0_3, %c0_4] : memref<1x128xf32, #tpu.memory_space<vmem>>, vector<1x128xf32>
    %4 = vector.broadcast %3 : vector<1x128xf32> to vector<8x128xf32>
    %5 = arith.addf %2, %4 : vector<8x128xf32>
    %cst_5 = arith.constant 0.000000e+00 : f32
    %6 = vector.broadcast %cst_5 : f32 to vector<8x128xf32>
    %7 = arith.maximumf %5, %6 : vector<8x128xf32>
    %c0_6 = arith.constant 0 : index
    %c0_7 = arith.constant 0 : index
    %8 = vector.load %arg4[%c0_6, %c0_7] : memref<128x1xf32, #tpu.memory_space<vmem>>, vector<128x1xf32>
    %cst_8 = arith.constant dense<0.000000e+00> : vector<8x1xf32>
    %9 = tpu.matmul %7, %8, %cst_8 {dimension_numbers = #tpu.dot_dimension_numbers<[1], [0], [0], [1], [0, 0, 1, 1], [], []>, precision = #tpu.contract_precision<fp32>} : vector<8x128xf32>, vector<128x1xf32>, vector<8x1xf32> -> vector<8x1xf32>
    %c0_9 = arith.constant 0 : index
    %c0_10 = arith.constant 0 : index
    %10 = memref.load %arg5[%c0_9, %c0_10] : memref<1x1xf32, #tpu.memory_space<smem>>
    %11 = vector.broadcast %10 : f32 to vector<8x1xf32>
    %12 = arith.addf %9, %11 : vector<8x1xf32>
    %13 = math.absf %12 : vector<8x1xf32>
    %cst_11 = arith.constant 0.000000e+00 : f32
    %14 = vector.broadcast %cst_11 : f32 to vector<8x1xf32>
    %15 = arith.subf %14, %13 : vector<8x1xf32>
    %16 = math.exp %15 : vector<8x1xf32>
    %cst_12 = arith.constant 1.000000e+00 : f32
    %17 = vector.broadcast %cst_12 : f32 to vector<8x1xf32>
    %18 = arith.addf %17, %16 : vector<8x1xf32>
    %cst_13 = arith.constant 1.000000e+00 : f32
    %19 = vector.broadcast %cst_13 : f32 to vector<8x1xf32>
    %20 = arith.divf %19, %18 : vector<8x1xf32>
    %21 = arith.mulf %16, %20 : vector<8x1xf32>
    %cst_14 = arith.constant 0.000000e+00 : f32
    %22 = vector.broadcast %cst_14 : f32 to vector<8x1xf32>
    %23 = arith.cmpf oge, %12, %22 : vector<8x1xf32>
    %24 = arith.select %23, %20, %21 : vector<8x1xi1>, vector<8x1xf32>
    %25 = arith.select %23, %21, %20 : vector<8x1xi1>, vector<8x1xf32>
    %26 = tpu.iota {dimensions = array<i32: 1>} : vector<8x2xi32>
    %c0_i32 = arith.constant 0 : i32
    %27 = vector.broadcast %c0_i32 : i32 to vector<8x2xi32>
    %28 = arith.cmpi eq, %26, %27 : vector<8x2xi32>
    %29 = vector.shape_cast %24 : vector<8x1xf32> to vector<8x1xf32>
    %30 = vector.broadcast %29 : vector<8x1xf32> to vector<8x2xf32>
    %31 = vector.shape_cast %25 : vector<8x1xf32> to vector<8x1xf32>
    %32 = vector.broadcast %31 : vector<8x1xf32> to vector<8x2xf32>
    %33 = arith.select %28, %30, %32 : vector<8x2xi1>, vector<8x2xf32>
    %c0_15 = arith.constant 0 : index
    %c0_16 = arith.constant 0 : index
    %34 = vector.load %arg6[%c0_15, %c0_16] : memref<8x2xf32, #tpu.memory_space<vmem>>, vector<8x2xf32>
    tpu.vector_store %arg6[%c0_15, %c0_16], %33 {strides = array<i32>} : memref<8x2xf32, #tpu.memory_space<vmem>>, vector<8x2xf32>,
    return
  }
  func.func @transform_0(%arg0: i32) -> (i32, i32) {
    %c0_i32 = arith.constant 0 : i32
    %c0_i32_0 = arith.constant 0 : i32
    return %arg0, %c0_i32 : i32, i32
  }
  func.func @transform_1(%arg0: i32) -> (i32, i32) {
    %c0_i32 = arith.constant 0 : i32
    %c0_i32_0 = arith.constant 0 : i32
    %c0_i32_1 = arith.constant 0 : i32
    return %c0_i32, %c0_i32_0 : i32, i32
  }
  func.func @transform_2(%arg0: i32) -> (i32, i32) {
    %c0_i32 = arith.constant 0 : i32
    %c0_i32_0 = arith.constant 0 : i32
    %c0_i32_1 = arith.constant 0 : i32
    return %c0_i32, %c0_i32_0 : i32, i32
  }
  func.func @transform_3(%arg0: i32) -> (i32, i32) {
    %c0_i32 = arith.constant 0 : i32
    %c0_i32_0 = arith.constant 0 : i32
    %c0_i32_1 = arith.constant 0 : i32
    return %c0_i32, %c0_i32_0 : i32, i32
  }
  func.func @transform_4(%arg0: i32) -> (i32, i32) {
    %c0_i32 = arith.constant 0 : i32
    %c0_i32_0 = arith.constant 0 : i32
    %c0_i32_1 = arith.constant 0 : i32
    return %c0_i32, %c0_i32_0 : i32, i32
  }
  func.func @transform_5(%arg0: i32) -> (i32, i32) {
    %c0_i32 = arith.constant 0 : i32
    %c0_i32_0 = arith.constant 0 : i32
    return %arg0, %c0_i32 : i32, i32
  }
}

</mosaic_0001>

<llo_original>
// kernel: tpu_custom_call.1
$region0: #{tpu_custom_call.1}
  #allocation0 [shape = 'u32[]', space=smem, size = 0x4, offset = 0x4, fixed_abs, tag = 'smem constant byte address 0x4 - core index']
  #allocation1 [shape = 'u32[144,128]{1,0:T(1,128)}', space=vmem, size = 0x12000, scoped, tag = 'internal scratch']
  #allocation2 [shape = 'f32[1,1]{1,0:T(1,128)S(6)}', space=smem, size = 0x200, scoped, tag = 'scoped memory for tpu_custom_call.1']
  %s0 = inlined_call_operand.vmem [shape: f32[8,4], index: 0, kind: input, shape index: {}]
  %s1 = inlined_call_operand.vmem [shape: f32[4,128], index: 1, kind: input, shape index: {}]
  %s2 = inlined_call_operand.vmem [shape: f32[1,128], index: 2, kind: input, shape index: {}]
  %s3 = inlined_call_operand.vmem [shape: f32[128,1], index: 3, kind: input, shape index: {}]
  %s4 = inlined_call_operand.<no memory space> [shape: f32[1,1], index: 4, kind: input, shape index: {}]
  %s5 = inlined_call_operand.vmem [shape: f32[8,2], index: 5, kind: output, shape index: {}]
  %s6 = sld [smem:[#allocation0]]
  $region30: #{tpu_custom_call.1} parent=0
    _
  %s8 = ssub.s32 1, %s6
  %s9 = scalar_select 0, %s8, %s6
  %10 = sst [smem:[#allocation2]] %s4
  // Predicated region
  $region2: #{tpu_custom_call.1} parent=0 // pred_check
    _
  $region3: #{tpu_custom_call.1} parent=0 // pred_check_branch
    %12 = sbr.rel (0) target = $region5
  $region4: #{tpu_custom_call.1} parent=0 // pred_region
    _
  $region5: #{tpu_custom_call.1} parent=0 // pred_fallthru
    _
  // Predicated region
  $region6: #{tpu_custom_call.1} parent=0 // pred_check
    _
  $region7: #{tpu_custom_call.1} parent=0 // pred_check_branch
    %14 = sbr.rel (0) target = $region9
  $region8: #{tpu_custom_call.1} parent=0 // pred_region
    _
  $region9: #{tpu_custom_call.1} parent=0 // pred_fallthru
    _
  // Predicated region
  $region10: #{tpu_custom_call.1} parent=0 // pred_check
    _
  $region11: #{tpu_custom_call.1} parent=0 // pred_check_branch
    %16 = sbr.rel (0) target = $region13
  $region12: #{tpu_custom_call.1} parent=0 // pred_region
    _
  $region13: #{tpu_custom_call.1} parent=0 // pred_fallthru
    _
  // Predicated region
  $region14: #{tpu_custom_call.1} parent=0 // pred_check
    _
  $region15: #{tpu_custom_call.1} parent=0 // pred_check_branch
    %18 = sbr.rel (0) target = $region17
  $region16: #{tpu_custom_call.1} parent=0 // pred_region
    _
  $region17: #{tpu_custom_call.1} parent=0 // pred_fallthru
    _
  // Predicated region
  $region18: #{tpu_custom_call.1} parent=0 // pred_check
    _
  $region19: #{tpu_custom_call.1} parent=0 // pred_check_branch
    %20 = sbr.rel (0) target = $region21
  $region20: #{tpu_custom_call.1} parent=0 // pred_region
    _
  $region21: #{tpu_custom_call.1} parent=0 // pred_fallthru
    _
  %v21 = vld [vmem:[%s0] sm:$0xff]
  %v22 = vld [vmem:[%s1] sm:$0xf]
  %v23 = vld [vmem:[%s2] sm:$0x1]
  %v25 = vlaneseq
  %v26 = vshrl.u32 %v25, 7
  %v27 = vsub.s32 0, %v26
  %v28 = vrot.slane %v23, %v27
  %vm30 = vcmask 31744
  %v32 = vsel %vm30, %v21, 0
  %vm34 = vcmask 1043456
  %v36 = vsel %vm34, %v22, 0
  %38 = vmatprep.subr.mxu0 0.0
  %v39 = vand.u32 %v36, 4294901760
  %40 = vmatpush1.msra.mxu0 %v39
  %41 = vmatprep.subr.mxu0 0.0
  %42 = vmatpush1.msra.mxu0 0.0
  %43 = vmatprep.subr.mxu0 0.0
  %44 = vmatpush1.msra.mxu0 0.0
  %45 = vmatprep.subr.mxu0 0.0
  %46 = vmatpush1.msra.mxu0 0.0
  %47 = vmatprep.subr.mxu0 0.0
  %48 = vmatpush1.msra.mxu0 0.0
  %49 = vmatprep.subr.mxu0 0.0
  %50 = vmatpush1.msra.mxu0 0.0
  %51 = vmatprep.subr.mxu0 0.0
  %52 = vmatpush1.msra.mxu0 0.0
  %53 = vmatprep.subr.mxu0 0.0
  %54 = vmatpush1.msra.mxu0 0.0
  %55 = vmatprep.subr.mxu0 0.0
  %56 = vmatpush1.msra.mxu0 0.0
  %57 = vmatprep.subr.mxu0 0.0
  %58 = vmatpush1.msra.mxu0 0.0
  %59 = vmatprep.subr.mxu0 0.0
  %60 = vmatpush1.msra.mxu0 0.0
  %61 = vmatprep.subr.mxu0 0.0
  %62 = vmatpush1.msra.mxu0 0.0
  %63 = vmatprep.subr.mxu0 0.0
  %64 = vmatpush1.msra.mxu0 0.0
  %65 = vmatprep.subr.mxu0 0.0
  %66 = vmatpush1.msra.mxu0 0.0
  %67 = vmatprep.subr.mxu0 0.0
  %68 = vmatpush1.msra.mxu0 0.0
  %69 = vmatprep.subr.mxu0 0.0
  %70 = vmatpush1.msra.mxu0 0.0
  %71 = vmatprep.subr.mxu0 0.0
  %72 = vmatpush1.msra.mxu0 0.0
  %73 = vmatprep.subr.mxu0 0.0
  %74 = vmatpush1.msra.mxu0 0.0
  %75 = vmatprep.subr.mxu0 0.0
  %76 = vmatpush1.msra.mxu0 0.0
  %77 = vmatprep.subr.mxu0 0.0
  %78 = vmatpush1.msra.mxu0 0.0
  %79 = vmatprep.subr.mxu0 0.0
  %80 = vmatpush1.msra.mxu0 0.0
  %81 = vmatprep.subr.mxu0 0.0
  %82 = vmatpush1.msra.mxu0 0.0
  %83 = vmatprep.subr.mxu0 0.0
  %84 = vmatpush1.msra.mxu0 0.0
  %85 = vmatprep.subr.mxu0 0.0
  %86 = vmatpush1.msra.mxu0 0.0
  %87 = vmatprep.subr.mxu0 0.0
  %88 = vmatpush1.msra.mxu0 0.0
  %89 = vmatprep.subr.mxu0 0.0
  %90 = vmatpush1.msra.mxu0 0.0
  %91 = vmatprep.subr.mxu0 0.0
  %92 = vmatpush1.msra.mxu0 0.0
  %93 = vmatprep.subr.mxu0 0.0
  %94 = vmatpush1.msra.mxu0 0.0
  %95 = vmatprep.subr.mxu0 0.0
  %96 = vmatpush1.msra.mxu0 0.0
  %97 = vmatprep.subr.mxu0 0.0
  %98 = vmatpush1.msra.mxu0 0.0
  %99 = vmatprep.subr.mxu0 0.0
  %100 = vmatpush1.msra.mxu0 0.0
  %101 = vmatprep.subr.mxu0 0.0
  %102 = vmatpush1.msra.mxu0 0.0
  %103 = vmatprep.mubr.f32.mxu0 0.0
  %v104 = vand.u32 %v32, 4294901760
  %v105 = vsub.f32 %v32, %v104
  %v106 = vand.u32 %v105, 4294901760
  %v107 = vsub.f32 %v105, %v106
  %v108 = vand.u32 %v107, 4294901760
  %109 = vmatmul.mubr.f32.gmra.mrb[0].mxu0 %v108
  %v110 = vpop.f32.mrb[0].mxu0
  %v111 = vadd.f32 %v28, %v110
  %v112 = vpop.f32.mrb[0].mxu0
  %113 = vdwg.mxu0
  %114 = vmatprep.subr.mxu0 0.0
  %v115 = vand.u32 %v36, 4294901760
  %v116 = vsub.f32 %v36, %v115
  %v117 = vand.u32 %v116, 4294901760
  %v118 = vsub.f32 %v116, %v117
  %v119 = vand.u32 %v118, 4294901760
  %120 = vmatpush1.msra.mxu0 %v119
  %121 = vmatprep.subr.mxu0 0.0
  %122 = vmatpush1.msra.mxu0 0.0
  %123 = vmatprep.subr.mxu0 0.0
  %124 = vmatpush1.msra.mxu0 0.0
  %125 = vmatprep.subr.mxu0 0.0
  %126 = vmatpush1.msra.mxu0 0.0
  %127 = vmatprep.subr.mxu0 0.0
  %128 = vmatpush1.msra.mxu0 0.0
  %129 = vmatprep.subr.mxu0 0.0
  %130 = vmatpush1.msra.mxu0 0.0
  %131 = vmatprep.subr.mxu0 0.0
  %132 = vmatpush1.msra.mxu0 0.0
  %133 = vmatprep.subr.mxu0 0.0
  %134 = vmatpush1.msra.mxu0 0.0
  %135 = vmatprep.subr.mxu0 0.0
  %136 = vmatpush1.msra.mxu0 0.0
  %137 = vmatprep.subr.mxu0 0.0
  %138 = vmatpush1.msra.mxu0 0.0
  %139 = vmatprep.subr.mxu0 0.0
  %140 = vmatpush1.msra.mxu0 0.0
  %141 = vmatprep.subr.mxu0 0.0
  %142 = vmatpush1.msra.mxu0 0.0
  %143 = vmatprep.subr.mxu0 0.0
  %144 = vmatpush1.msra.mxu0 0.0
  %145 = vmatprep.subr.mxu0 0.0
  %146 = vmatpush1.msra.mxu0 0.0
  %147 = vmatprep.subr.mxu0 0.0
  %148 = vmatpush1.msra.mxu0 0.0
  %149 = vmatprep.subr.mxu0 0.0
  %150 = vmatpush1.msra.mxu0 0.0
  %151 = vmatprep.subr.mxu0 0.0
  %152 = vmatpush1.msra.mxu0 0.0
  %153 = vmatprep.subr.mxu0 0.0
  %154 = vmatpush1.msra.mxu0 0.0
  %155 = vmatprep.subr.mxu0 0.0
  %156 = vmatpush1.msra.mxu0 0.0
  %157 = vmatprep.subr.mxu0 0.0
  %158 = vmatpush1.msra.mxu0 0.0
  %159 = vmatprep.subr.mxu0 0.0
  %160 = vmatpush1.msra.mxu0 0.0
  %161 = vmatprep.subr.mxu0 0.0
  %162 = vmatpush1.msra.mxu0 0.0
  %163 = vmatprep.subr.mxu0 0.0
  %164 = vmatpush1.msra.mxu0 0.0
  %165 = vmatprep.subr.mxu0 0.0
  %166 = vmatpush1.msra.mxu0 0.0
  %167 = vmatprep.subr.mxu0 0.0
  %168 = vmatpush1.msra.mxu0 0.0
  %169 = vmatprep.subr.mxu0 0.0
  %170 = vmatpush1.msra.mxu0 0.0
  %171 = vmatprep.subr.mxu0 0.0
  %172 = vmatpush1.msra.mxu0 0.0
  %173 = vmatprep.subr.mxu0 0.0
  %174 = vmatpush1.msra.mxu0 0.0
  %175 = vmatprep.subr.mxu0 0.0
  %176 = vmatpush1.msra.mxu0 0.0
  %177 = vmatprep.subr.mxu0 0.0
  %178 = vmatpush1.msra.mxu0 0.0
  %179 = vmatprep.subr.mxu0 0.0
  %180 = vmatpush1.msra.mxu0 0.0
  %181 = vmatprep.subr.mxu0 0.0
  %182 = vmatpush1.msra.mxu0 0.0
  %183 = vmatprep.mubr.f32.mxu0 0.0
  %v184 = vand.u32 %v32, 4294901760
  %185 = vmatmul.mubr.f32.gmra.mrb[0].mxu0 %v184
  %v186 = vpop.f32.mrb[0].mxu0
  %v187 = vadd.f32 %v111, %v186
  %v188 = vpop.f32.mrb[0].mxu0
  %189 = vdwg.mxu0
  %190 = vmatprep.subr.mxu0 0.0
  %v191 = vand.u32 %v36, 4294901760
  %v192 = vsub.f32 %v36, %v191
  %193 = vmatpush1.msra.mxu0 %v192
  %194 = vmatprep.subr.mxu0 0.0
  %195 = vmatpush1.msra.mxu0 0.0
  %196 = vmatprep.subr.mxu0 0.0
  %197 = vmatpush1.msra.mxu0 0.0
  %198 = vmatprep.subr.mxu0 0.0
  %199 = vmatpush1.msra.mxu0 0.0
  %200 = vmatprep.subr.mxu0 0.0
  %201 = vmatpush1.msra.mxu0 0.0
  %202 = vmatprep.subr.mxu0 0.0
  %203 = vmatpush1.msra.mxu0 0.0
  %204 = vmatprep.subr.mxu0 0.0
  %205 = vmatpush1.msra.mxu0 0.0
  %206 = vmatprep.subr.mxu0 0.0
  %207 = vmatpush1.msra.mxu0 0.0
  %208 = vmatprep.subr.mxu0 0.0
  %209 = vmatpush1.msra.mxu0 0.0
  %210 = vmatprep.subr.mxu0 0.0
  %211 = vmatpush1.msra.mxu0 0.0
  %212 = vmatprep.subr.mxu0 0.0
  %213 = vmatpush1.msra.mxu0 0.0
  %214 = vmatprep.subr.mxu0 0.0
  %215 = vmatpush1.msra.mxu0 0.0
  %216 = vmatprep.subr.mxu0 0.0
  %217 = vmatpush1.msra.mxu0 0.0
  %218 = vmatprep.subr.mxu0 0.0
  %219 = vmatpush1.msra.mxu0 0.0
  %220 = vmatprep.subr.mxu0 0.0
  %221 = vmatpush1.msra.mxu0 0.0
  %222 = vmatprep.subr.mxu0 0.0
  %223 = vmatpush1.msra.mxu0 0.0
  %224 = vmatprep.subr.mxu0 0.0
  %225 = vmatpush1.msra.mxu0 0.0
  %226 = vmatprep.subr.mxu0 0.0
  %227 = vmatpush1.msra.mxu0 0.0
  %228 = vmatprep.subr.mxu0 0.0
  %229 = vmatpush1.msra.mxu0 0.0
  %230 = vmatprep.subr.mxu0 0.0
  %231 = vmatpush1.msra.mxu0 0.0
  %232 = vmatprep.subr.mxu0 0.0
  %233 = vmatpush1.msra.mxu0 0.0
  %234 = vmatprep.subr.mxu0 0.0
  %235 = vmatpush1.msra.mxu0 0.0
  %236 = vmatprep.subr.mxu0 0.0
  %237 = vmatpush1.msra.mxu0 0.0
  %238 = vmatprep.subr.mxu0 0.0
  %239 = vmatpush1.msra.mxu0 0.0
  %240 = vmatprep.subr.mxu0 0.0
  %241 = vmatpush1.msra.mxu0 0.0
  %242 = vmatprep.subr.mxu0 0.0
  %243 = vmatpush1.msra.mxu0 0.0
  %244 = vmatprep.subr.mxu0 0.0
  %245 = vmatpush1.msra.mxu0 0.0
  %246 = vmatprep.subr.mxu0 0.0
  %247 = vmatpush1.msra.mxu0 0.0
  %248 = vmatprep.subr.mxu0 0.0
  %249 = vmatpush1.msra.mxu0 0.0
  %250 = vmatprep.subr.mxu0 0.0
  %251 = vmatpush1.msra.mxu0 0.0
  %252 = vmatprep.subr.mxu0 0.0
  %253 = vmatpush1.msra.mxu0 0.0
  %254 = vmatprep.subr.mxu0 0.0
  %255 = vmatpush1.msra.mxu0 0.0
  %256 = vmatprep.mubr.f32.mxu0 0.0
  %v257 = vand.u32 %v32, 4294901760
  %v258 = vsub.f32 %v32, %v257
  %259 = vmatmul.mubr.f32.gmra.mrb[0].mxu0 %v258
  %v260 = vpop.f32.mrb[0].mxu0
  %v261 = vadd.f32 %v187, %v260
  %v262 = vpop.f32.mrb[0].mxu0
  %263 = vdwg.mxu0
  %264 = vmatprep.subr.mxu0 0.0
  %v265 = vand.u32 %v36, 4294901760
  %266 = vmatpush1.msra.mxu0 %v265
  %267 = vmatprep.subr.mxu0 0.0
  %268 = vmatpush1.msra.mxu0 0.0
  %269 = vmatprep.subr.mxu0 0.0
  %270 = vmatpush1.msra.mxu0 0.0
  %271 = vmatprep.subr.mxu0 0.0
  %272 = vmatpush1.msra.mxu0 0.0
  %273 = vmatprep.subr.mxu0 0.0
  %274 = vmatpush1.msra.mxu0 0.0
  %275 = vmatprep.subr.mxu0 0.0
  %276 = vmatpush1.msra.mxu0 0.0
  %277 = vmatprep.subr.mxu0 0.0
  %278 = vmatpush1.msra.mxu0 0.0
  %279 = vmatprep.subr.mxu0 0.0
  %280 = vmatpush1.msra.mxu0 0.0
  %281 = vmatprep.subr.mxu0 0.0
  %282 = vmatpush1.msra.mxu0 0.0
  %283 = vmatprep.subr.mxu0 0.0
  %284 = vmatpush1.msra.mxu0 0.0
  %285 = vmatprep.subr.mxu0 0.0
  %286 = vmatpush1.msra.mxu0 0.0
  %287 = vmatprep.subr.mxu0 0.0
  %288 = vmatpush1.msra.mxu0 0.0
  %289 = vmatprep.subr.mxu0 0.0
  %290 = vmatpush1.msra.mxu0 0.0
  %291 = vmatprep.subr.mxu0 0.0
  %292 = vmatpush1.msra.mxu0 0.0
  %293 = vmatprep.subr.mxu0 0.0
  %294 = vmatpush1.msra.mxu0 0.0
  %295 = vmatprep.subr.mxu0 0.0
  %296 = vmatpush1.msra.mxu0 0.0
  %297 = vmatprep.subr.mxu0 0.0
  %298 = vmatpush1.msra.mxu0 0.0
  %299 = vmatprep.subr.mxu0 0.0
  %300 = vmatpush1.msra.mxu0 0.0
  %301 = vmatprep.subr.mxu0 0.0
  %302 = vmatpush1.msra.mxu0 0.0
  %303 = vmatprep.subr.mxu0 0.0
  %304 = vmatpush1.msra.mxu0 0.0
  %305 = vmatprep.subr.mxu0 0.0
  %306 = vmatpush1.msra.mxu0 0.0
  %307 = vmatprep.subr.mxu0 0.0
  %308 = vmatpush1.msra.mxu0 0.0
  %309 = vmatprep.subr.mxu0 0.0
  %310 = vmatpush1.msra.mxu0 0.0
  %311 = vmatprep.subr.mxu0 0.0
  %312 = vmatpush1.msra.mxu0 0.0
  %313 = vmatprep.subr.mxu0 0.0
  %314 = vmatpush1.msra.mxu0 0.0
  %315 = vmatprep.subr.mxu0 0.0
  %316 = vmatpush1.msra.mxu0 0.0
  %317 = vmatprep.subr.mxu0 0.0
  %318 = vmatpush1.msra.mxu0 0.0
  %319 = vmatprep.subr.mxu0 0.0
  %320 = vmatpush1.msra.mxu0 0.0
  %321 = vmatprep.subr.mxu0 0.0
  %322 = vmatpush1.msra.mxu0 0.0
  %323 = vmatprep.subr.mxu0 0.0
  %324 = vmatpush1.msra.mxu0 0.0
  %325 = vmatprep.subr.mxu0 0.0
  %326 = vmatpush1.msra.mxu0 0.0
  %327 = vmatprep.subr.mxu0 0.0
  %328 = vmatpush1.msra.mxu0 0.0
  %329 = vmatprep.mubr.f32.mxu0 0.0
  %v330 = vand.u32 %v32, 4294901760
  %v331 = vsub.f32 %v32, %v330
  %v332 = vand.u32 %v331, 4294901760
  %333 = vmatmul.mubr.f32.gmra.mrb[0].mxu0 %v332
  %v334 = vpop.f32.mrb[0].mxu0
  %v335 = vadd.f32 %v261, %v334
  %v336 = vpop.f32.mrb[0].mxu0
  %337 = vdwg.mxu0
  %338 = vmatprep.subr.mxu0 0.0
  %v339 = vand.u32 %v36, 4294901760
  %v340 = vsub.f32 %v36, %v339
  %v341 = vand.u32 %v340, 4294901760
  %342 = vmatpush1.msra.mxu0 %v341
  %343 = vmatprep.subr.mxu0 0.0
  %344 = vmatpush1.msra.mxu0 0.0
  %345 = vmatprep.subr.mxu0 0.0
  %346 = vmatpush1.msra.mxu0 0.0
  %347 = vmatprep.subr.mxu0 0.0
  %348 = vmatpush1.msra.mxu0 0.0
  %349 = vmatprep.subr.mxu0 0.0
  %350 = vmatpush1.msra.mxu0 0.0
  %351 = vmatprep.subr.mxu0 0.0
  %352 = vmatpush1.msra.mxu0 0.0
  %353 = vmatprep.subr.mxu0 0.0
  %354 = vmatpush1.msra.mxu0 0.0
  %355 = vmatprep.subr.mxu0 0.0
  %356 = vmatpush1.msra.mxu0 0.0
  %357 = vmatprep.subr.mxu0 0.0
  %358 = vmatpush1.msra.mxu0 0.0
  %359 = vmatprep.subr.mxu0 0.0
  %360 = vmatpush1.msra.mxu0 0.0
  %361 = vmatprep.subr.mxu0 0.0
  %362 = vmatpush1.msra.mxu0 0.0
  %363 = vmatprep.subr.mxu0 0.0
  %364 = vmatpush1.msra.mxu0 0.0
  %365 = vmatprep.subr.mxu0 0.0
  %366 = vmatpush1.msra.mxu0 0.0
  %367 = vmatprep.subr.mxu0 0.0
  %368 = vmatpush1.msra.mxu0 0.0
  %369 = vmatprep.subr.mxu0 0.0
  %370 = vmatpush1.msra.mxu0 0.0
  %371 = vmatprep.subr.mxu0 0.0
  %372 = vmatpush1.msra.mxu0 0.0
  %373 = vmatprep.subr.mxu0 0.0
  %374 = vmatpush1.msra.mxu0 0.0
  %375 = vmatprep.subr.mxu0 0.0
  %376 = vmatpush1.msra.mxu0 0.0
  %377 = vmatprep.subr.mxu0 0.0
  %378 = vmatpush1.msra.mxu0 0.0
  %379 = vmatprep.subr.mxu0 0.0
  %380 = vmatpush1.msra.mxu0 0.0
  %381 = vmatprep.subr.mxu0 0.0
  %382 = vmatpush1.msra.mxu0 0.0
  %383 = vmatprep.subr.mxu0 0.0
  %384 = vmatpush1.msra.mxu0 0.0
  %385 = vmatprep.subr.mxu0 0.0
  %386 = vmatpush1.msra.mxu0 0.0
  %387 = vmatprep.subr.mxu0 0.0
  %388 = vmatpush1.msra.mxu0 0.0
  %389 = vmatprep.subr.mxu0 0.0
  %390 = vmatpush1.msra.mxu0 0.0
  %391 = vmatprep.subr.mxu0 0.0
  %392 = vmatpush1.msra.mxu0 0.0
  %393 = vmatprep.subr.mxu0 0.0
  %394 = vmatpush1.msra.mxu0 0.0
  %395 = vmatprep.subr.mxu0 0.0
  %396 = vmatpush1.msra.mxu0 0.0
  %397 = vmatprep.subr.mxu0 0.0
  %398 = vmatpush1.msra.mxu0 0.0
  %399 = vmatprep.subr.mxu0 0.0
  %400 = vmatpush1.msra.mxu0 0.0
  %401 = vmatprep.subr.mxu0 0.0
  %402 = vmatpush1.msra.mxu0 0.0
  %403 = vmatprep.subr.mxu0 0.0
  %404 = vmatpush1.msra.mxu0 0.0
  %405 = vmatprep.mubr.f32.mxu0 0.0
  %v406 = vand.u32 %v32, 4294901760
  %407 = vmatmul.mubr.f32.gmra.mrb[0].mxu0 %v406
  %v408 = vpop.f32.mrb[0].mxu0
  %v409 = vadd.f32 %v335, %v408
  %v410 = vpop.f32.mrb[0].mxu0
  %411 = vdwg.mxu0
  %412 = vmatprep.subr.mxu0 0.0
  %v413 = vand.u32 %v36, 4294901760
  %414 = vmatpush1.msra.mxu0 %v413
  %415 = vmatprep.subr.mxu0 0.0
  %416 = vmatpush1.msra.mxu0 0.0
  %417 = vmatprep.subr.mxu0 0.0
  %418 = vmatpush1.msra.mxu0 0.0
  %419 = vmatprep.subr.mxu0 0.0
  %420 = vmatpush1.msra.mxu0 0.0
  %421 = vmatprep.subr.mxu0 0.0
  %422 = vmatpush1.msra.mxu0 0.0
  %423 = vmatprep.subr.mxu0 0.0
  %424 = vmatpush1.msra.mxu0 0.0
  %425 = vmatprep.subr.mxu0 0.0
  %426 = vmatpush1.msra.mxu0 0.0
  %427 = vmatprep.subr.mxu0 0.0
  %428 = vmatpush1.msra.mxu0 0.0
  %429 = vmatprep.subr.mxu0 0.0
  %430 = vmatpush1.msra.mxu0 0.0
  %431 = vmatprep.subr.mxu0 0.0
  %432 = vmatpush1.msra.mxu0 0.0
  %433 = vmatprep.subr.mxu0 0.0
  %434 = vmatpush1.msra.mxu0 0.0
  %435 = vmatprep.subr.mxu0 0.0
  %436 = vmatpush1.msra.mxu0 0.0
  %437 = vmatprep.subr.mxu0 0.0
  %438 = vmatpush1.msra.mxu0 0.0
  %439 = vmatprep.subr.mxu0 0.0
  %440 = vmatpush1.msra.mxu0 0.0
  %441 = vmatprep.subr.mxu0 0.0
  %442 = vmatpush1.msra.mxu0 0.0
  %443 = vmatprep.subr.mxu0 0.0
  %444 = vmatpush1.msra.mxu0 0.0
  %445 = vmatprep.subr.mxu0 0.0
  %446 = vmatpush1.msra.mxu0 0.0
  %447 = vmatprep.subr.mxu0 0.0
  %448 = vmatpush1.msra.mxu0 0.0
  %449 = vmatprep.subr.mxu0 0.0
  %450 = vmatpush1.msra.mxu0 0.0
  %451 = vmatprep.subr.mxu0 0.0
  %452 = vmatpush1.msra.mxu0 0.0
  %453 = vmatprep.subr.mxu0 0.0
  %454 = vmatpush1.msra.mxu0 0.0
  %455 = vmatprep.subr.mxu0 0.0
  %456 = vmatpush1.msra.mxu0 0.0
  %457 = vmatprep.subr.mxu0 0.0
  %458 = vmatpush1.msra.mxu0 0.0
  %459 = vmatprep.subr.mxu0 0.0
  %460 = vmatpush1.msra.mxu0 0.0
  %461 = vmatprep.subr.mxu0 0.0
  %462 = vmatpush1.msra.mxu0 0.0
  %463 = vmatprep.subr.mxu0 0.0
  %464 = vmatpush1.msra.mxu0 0.0
  %465 = vmatprep.subr.mxu0 0.0
  %466 = vmatpush1.msra.mxu0 0.0
  %467 = vmatprep.subr.mxu0 0.0
  %468 = vmatpush1.msra.mxu0 0.0
  %469 = vmatprep.subr.mxu0 0.0
  %470 = vmatpush1.msra.mxu0 0.0
  %471 = vmatprep.subr.mxu0 0.0
  %472 = vmatpush1.msra.mxu0 0.0
  %473 = vmatprep.subr.mxu0 0.0
  %474 = vmatpush1.msra.mxu0 0.0
  %475 = vmatprep.subr.mxu0 0.0
  %476 = vmatpush1.msra.mxu0 0.0
  %477 = vmatprep.mubr.f32.mxu0 0.0
  %v478 = vand.u32 %v32, 4294901760
  %479 = vmatmul.mubr.f32.gmra.mrb[0].mxu0 %v478
  %v480 = vpop.f32.mrb[0].mxu0
  %v481 = vadd.f32 %v409, %v480
  %v482 = vpop.f32.mrb[0].mxu0
  %483 = vdwg.mxu0
  %v484 = vmax.f32 %v481, 0.0
  %v485 = vld [vmem:[%s3] sm:$0xff]
  %v486 = vld [vmem:[%s3 + $0x8] sm:$0xff]
  %v487 = vld [vmem:[%s3 + $0x10] sm:$0xff]
  %v488 = vld [vmem:[%s3 + $0x18] sm:$0xff]
  %v489 = vld [vmem:[%s3 + $0x20] sm:$0xff]
  %v490 = vld [vmem:[%s3 + $0x28] sm:$0xff]
  %v491 = vld [vmem:[%s3 + $0x30] sm:$0xff]
  %v492 = vld [vmem:[%s3 + $0x38] sm:$0xff]
  %v493 = vld [vmem:[%s3 + $0x40] sm:$0xff]
  %v494 = vld [vmem:[%s3 + $0x48] sm:$0xff]
  %v495 = vld [vmem:[%s3 + $0x50] sm:$0xff]
  %v496 = vld [vmem:[%s3 + $0x58] sm:$0xff]
  %v497 = vld [vmem:[%s3 + $0x60] sm:$0xff]
  %v498 = vld [vmem:[%s3 + $0x68] sm:$0xff]
  %v499 = vld [vmem:[%s3 + $0x70] sm:$0xff]
  %v500 = vld [vmem:[%s3 + $0x78] sm:$0xff]
  %s501 = sld [smem:[#allocation2]]
  %v502 = vstv %s501
  %503 = vmatprep.subr.mxu0 0.0
  %v504 = vand.u32 %v485, 4294901760
  %505 = vmatpush1.msra.mxu0 %v504
  %506 = vmatprep.subr.mxu0 0.0
  %v507 = vand.u32 %v486, 4294901760
  %508 = vmatpush1.msra.mxu0 %v507
  %509 = vmatprep.subr.mxu0 0.0
  %v510 = vand.u32 %v487, 4294901760
  %511 = vmatpush1.msra.mxu0 %v510
  %512 = vmatprep.subr.mxu0 0.0
  %v513 = vand.u32 %v488, 4294901760
  %514 = vmatpush1.msra.mxu0 %v513
  %515 = vmatprep.subr.mxu0 0.0
  %v516 = vand.u32 %v489, 4294901760
  %517 = vmatpush1.msra.mxu0 %v516
  %518 = vmatprep.subr.mxu0 0.0
  %v519 = vand.u32 %v490, 4294901760
  %520 = vmatpush1.msra.mxu0 %v519
  %521 = vmatprep.subr.mxu0 0.0
  %v522 = vand.u32 %v491, 4294901760
  %523 = vmatpush1.msra.mxu0 %v522
  %524 = vmatprep.subr.mxu0 0.0
  %v525 = vand.u32 %v492, 4294901760
  %526 = vmatpush1.msra.mxu0 %v525
  %527 = vmatprep.subr.mxu0 0.0
  %v528 = vand.u32 %v493, 4294901760
  %529 = vmatpush1.msra.mxu0 %v528
  %530 = vmatprep.subr.mxu0 0.0
  %v531 = vand.u32 %v494, 4294901760
  %532 = vmatpush1.msra.mxu0 %v531
  %533 = vmatprep.subr.mxu0 0.0
  %v534 = vand.u32 %v495, 4294901760
  %535 = vmatpush1.msra.mxu0 %v534
  %536 = vmatprep.subr.mxu0 0.0
  %v537 = vand.u32 %v496, 4294901760
  %538 = vmatpush1.msra.mxu0 %v537
  %539 = vmatprep.subr.mxu0 0.0
  %v540 = vand.u32 %v497, 4294901760
  %541 = vmatpush1.msra.mxu0 %v540
  %542 = vmatprep.subr.mxu0 0.0
  %v543 = vand.u32 %v498, 4294901760
  %544 = vmatpush1.msra.mxu0 %v543
  %545 = vmatprep.subr.mxu0 0.0
  %v546 = vand.u32 %v499, 4294901760
  %547 = vmatpush1.msra.mxu0 %v546
  %548 = vmatprep.subr.mxu0 0.0
  %v549 = vand.u32 %v500, 4294901760
  %550 = vmatpush1.msra.mxu0 %v549
  %551 = vmatprep.subr.mxu0 0.0
  %552 = vmatpush1.msra.mxu0 0.0
  %553 = vmatprep.subr.mxu0 0.0
  %554 = vmatpush1.msra.mxu0 0.0
  %555 = vmatprep.subr.mxu0 0.0
  %556 = vmatpush1.msra.mxu0 0.0
  %557 = vmatprep.subr.mxu0 0.0
  %558 = vmatpush1.msra.mxu0 0.0
  %559 = vmatprep.subr.mxu0 0.0
  %560 = vmatpush1.msra.mxu0 0.0
  %561 = vmatprep.subr.mxu0 0.0
  %562 = vmatpush1.msra.mxu0 0.0
  %563 = vmatprep.subr.mxu0 0.0
  %564 = vmatpush1.msra.mxu0 0.0
  %565 = vmatprep.subr.mxu0 0.0
  %566 = vmatpush1.msra.mxu0 0.0
  %567 = vmatprep.subr.mxu0 0.0
  %568 = vmatpush1.msra.mxu0 0.0
  %569 = vmatprep.subr.mxu0 0.0
  %570 = vmatpush1.msra.mxu0 0.0
  %571 = vmatprep.subr.mxu0 0.0
  %572 = vmatpush1.msra.mxu0 0.0
  %573 = vmatprep.subr.mxu0 0.0
  %574 = vmatpush1.msra.mxu0 0.0
  %575 = vmatprep.subr.mxu0 0.0
  %576 = vmatpush1.msra.mxu0 0.0
  %577 = vmatprep.subr.mxu0 0.0
  %578 = vmatpush1.msra.mxu0 0.0
  %579 = vmatprep.subr.mxu0 0.0
  %580 = vmatpush1.msra.mxu0 0.0
  %581 = vmatprep.subr.mxu0 0.0
  %582 = vmatpush1.msra.mxu0 0.0
  %583 = vmatprep.mubr.f32.mxu0 0.0
  %v584 = vand.u32 %v484, 4294901760
  %v585 = vsub.f32 %v484, %v584
  %v586 = vand.u32 %v585, 4294901760
  %v587 = vsub.f32 %v585, %v586
  %v588 = vand.u32 %v587, 4294901760
  %589 = vmatmul.mubr.f32.gmra.mrb[0].mxu0 %v588
  %v590 = vpop.f32.mrb[0].mxu0
  %v591 = vadd.f32 %v502, %v590
  %v592 = vpop.f32.mrb[0].mxu0
  %593 = vdwg.mxu0
  %594 = vmatprep.subr.mxu0 0.0
  %v595 = vand.u32 %v485, 4294901760
  %v596 = vsub.f32 %v485, %v595
  %v597 = vand.u32 %v596, 4294901760
  %v598 = vsub.f32 %v596, %v597
  %v599 = vand.u32 %v598, 4294901760
  %600 = vmatpush1.msra.mxu0 %v599
  %601 = vmatprep.subr.mxu0 0.0
  %v602 = vand.u32 %v486, 4294901760
  %v603 = vsub.f32 %v486, %v602
  %v604 = vand.u32 %v603, 4294901760
  %v605 = vsub.f32 %v603, %v604
  %v606 = vand.u32 %v605, 4294901760
  %607 = vmatpush1.msra.mxu0 %v606
  %608 = vmatprep.subr.mxu0 0.0
  %v609 = vand.u32 %v487, 4294901760
  %v610 = vsub.f32 %v487, %v609
  %v611 = vand.u32 %v610, 4294901760
  %v612 = vsub.f32 %v610, %v611
  %v613 = vand.u32 %v612, 4294901760
  %614 = vmatpush1.msra.mxu0 %v613
  %615 = vmatprep.subr.mxu0 0.0
  %v616 = vand.u32 %v488, 4294901760
  %v617 = vsub.f32 %v488, %v616
  %v618 = vand.u32 %v617, 4294901760
  %v619 = vsub.f32 %v617, %v618
  %v620 = vand.u32 %v619, 4294901760
  %621 = vmatpush1.msra.mxu0 %v620
  %622 = vmatprep.subr.mxu0 0.0
  %v623 = vand.u32 %v489, 4294901760
  %v624 = vsub.f32 %v489, %v623
  %v625 = vand.u32 %v624, 4294901760
  %v626 = vsub.f32 %v624, %v625
  %v627 = vand.u32 %v626, 4294901760
  %628 = vmatpush1.msra.mxu0 %v627
  %629 = vmatprep.subr.mxu0 0.0
  %v630 = vand.u32 %v490, 4294901760
  %v631 = vsub.f32 %v490, %v630
  %v632 = vand.u32 %v631, 4294901760
  %v633 = vsub.f32 %v631, %v632
  %v634 = vand.u32 %v633, 4294901760
  %635 = vmatpush1.msra.mxu0 %v634
  %636 = vmatprep.subr.mxu0 0.0
  %v637 = vand.u32 %v491, 4294901760
  %v638 = vsub.f32 %v491, %v637
  %v639 = vand.u32 %v638, 4294901760
  %v640 = vsub.f32 %v638, %v639
  %v641 = vand.u32 %v640, 4294901760
  %642 = vmatpush1.msra.mxu0 %v641
  %643 = vmatprep.subr.mxu0 0.0
  %v644 = vand.u32 %v492, 4294901760
  %v645 = vsub.f32 %v492, %v644
  %v646 = vand.u32 %v645, 4294901760
  %v647 = vsub.f32 %v645, %v646
  %v648 = vand.u32 %v647, 4294901760
  %649 = vmatpush1.msra.mxu0 %v648
  %650 = vmatprep.subr.mxu0 0.0
  %v651 = vand.u32 %v493, 4294901760
  %v652 = vsub.f32 %v493, %v651
  %v653 = vand.u32 %v652, 4294901760
  %v654 = vsub.f32 %v652, %v653
  %v655 = vand.u32 %v654, 4294901760
  %656 = vmatpush1.msra.mxu0 %v655
  %657 = vmatprep.subr.mxu0 0.0
  %v658 = vand.u32 %v494, 4294901760
  %v659 = vsub.f32 %v494, %v658
  %v660 = vand.u32 %v659, 4294901760
  %v661 = vsub.f32 %v659, %v660
  %v662 = vand.u32 %v661, 4294901760
  %663 = vmatpush1.msra.mxu0 %v662
  %664 = vmatprep.subr.mxu0 0.0
  %v665 = vand.u32 %v495, 4294901760
  %v666 = vsub.f32 %v495, %v665
  %v667 = vand.u32 %v666, 4294901760
  %v668 = vsub.f32 %v666, %v667
  %v669 = vand.u32 %v668, 4294901760
  %670 = vmatpush1.msra.mxu0 %v669
  %671 = vmatprep.subr.mxu0 0.0
  %v672 = vand.u32 %v496, 4294901760
  %v673 = vsub.f32 %v496, %v672
  %v674 = vand.u32 %v673, 4294901760
  %v675 = vsub.f32 %v673, %v674
  %v676 = vand.u32 %v675, 4294901760
  %677 = vmatpush1.msra.mxu0 %v676
  %678 = vmatprep.subr.mxu0 0.0
  %v679 = vand.u32 %v497, 4294901760
  %v680 = vsub.f32 %v497, %v679
  %v681 = vand.u32 %v680, 4294901760
  %v682 = vsub.f32 %v680, %v681
  %v683 = vand.u32 %v682, 4294901760
  %684 = vmatpush1.msra.mxu0 %v683
  %685 = vmatprep.subr.mxu0 0.0
  %v686 = vand.u32 %v498, 4294901760
  %v687 = vsub.f32 %v498, %v686
  %v688 = vand.u32 %v687, 4294901760
  %v689 = vsub.f32 %v687, %v688
  %v690 = vand.u32 %v689, 4294901760
  %691 = vmatpush1.msra.mxu0 %v690
  %692 = vmatprep.subr.mxu0 0.0
  %v693 = vand.u32 %v499, 4294901760
  %v694 = vsub.f32 %v499, %v693
  %v695 = vand.u32 %v694, 4294901760
  %v696 = vsub.f32 %v694, %v695
  %v697 = vand.u32 %v696, 4294901760
  %698 = vmatpush1.msra.mxu0 %v697
  %699 = vmatprep.subr.mxu0 0.0
  %v700 = vand.u32 %v500, 4294901760
  %v701 = vsub.f32 %v500, %v700
  %v702 = vand.u32 %v701, 4294901760
  %v703 = vsub.f32 %v701, %v702
  %v704 = vand.u32 %v703, 4294901760
  %705 = vmatpush1.msra.mxu0 %v704
  %706 = vmatprep.subr.mxu0 0.0
  %707 = vmatpush1.msra.mxu0 0.0
  %708 = vmatprep.subr.mxu0 0.0
  %709 = vmatpush1.msra.mxu0 0.0
  %710 = vmatprep.subr.mxu0 0.0
  %711 = vmatpush1.msra.mxu0 0.0
  %712 = vmatprep.subr.mxu0 0.0
  %713 = vmatpush1.msra.mxu0 0.0
  %714 = vmatprep.subr.mxu0 0.0
  %715 = vmatpush1.msra.mxu0 0.0
  %716 = vmatprep.subr.mxu0 0.0
  %717 = vmatpush1.msra.mxu0 0.0
  %718 = vmatprep.subr.mxu0 0.0
  %719 = vmatpush1.msra.mxu0 0.0
  %720 = vmatprep.subr.mxu0 0.0
  %721 = vmatpush1.msra.mxu0 0.0
  %722 = vmatprep.subr.mxu0 0.0
  %723 = vmatpush1.msra.mxu0 0.0
  %724 = vmatprep.subr.mxu0 0.0
  %725 = vmatpush1.msra.mxu0 0.0
  %726 = vmatprep.subr.mxu0 0.0
  %727 = vmatpush1.msra.mxu0 0.0
  %728 = vmatprep.subr.mxu0 0.0
  %729 = vmatpush1.msra.mxu0 0.0
  %730 = vmatprep.subr.mxu0 0.0
  %731 = vmatpush1.msra.mxu0 0.0
  %732 = vmatprep.subr.mxu0 0.0
  %733 = vmatpush1.msra.mxu0 0.0
  %734 = vmatprep.subr.mxu0 0.0
  %735 = vmatpush1.msra.mxu0 0.0
  %736 = vmatprep.subr.mxu0 0.0
  %737 = vmatpush1.msra.mxu0 0.0
  %738 = vmatprep.mubr.f32.mxu0 0.0
  %v739 = vand.u32 %v484, 4294901760
  %740 = vmatmul.mubr.f32.gmra.mrb[0].mxu0 %v739
  %v741 = vpop.f32.mrb[0].mxu0
  %v742 = vadd.f32 %v591, %v741
  %v743 = vpop.f32.mrb[0].mxu0
  %744 = vdwg.mxu0
  %745 = vmatprep.subr.mxu0 0.0
  %v746 = vand.u32 %v485, 4294901760
  %v747 = vsub.f32 %v485, %v746
  %748 = vmatpush1.msra.mxu0 %v747
  %749 = vmatprep.subr.mxu0 0.0
  %v750 = vand.u32 %v486, 4294901760
  %v751 = vsub.f32 %v486, %v750
  %752 = vmatpush1.msra.mxu0 %v751
  %753 = vmatprep.subr.mxu0 0.0
  %v754 = vand.u32 %v487, 4294901760
  %v755 = vsub.f32 %v487, %v754
  %756 = vmatpush1.msra.mxu0 %v755
  %757 = vmatprep.subr.mxu0 0.0
  %v758 = vand.u32 %v488, 4294901760
  %v759 = vsub.f32 %v488, %v758
  %760 = vmatpush1.msra.mxu0 %v759
  %761 = vmatprep.subr.mxu0 0.0
  %v762 = vand.u32 %v489, 4294901760
  %v763 = vsub.f32 %v489, %v762
  %764 = vmatpush1.msra.mxu0 %v763
  %765 = vmatprep.subr.mxu0 0.0
  %v766 = vand.u32 %v490, 4294901760
  %v767 = vsub.f32 %v490, %v766
  %768 = vmatpush1.msra.mxu0 %v767
  %769 = vmatprep.subr.mxu0 0.0
  %v770 = vand.u32 %v491, 4294901760
  %v771 = vsub.f32 %v491, %v770
  %772 = vmatpush1.msra.mxu0 %v771
  %773 = vmatprep.subr.mxu0 0.0
  %v774 = vand.u32 %v492, 4294901760
  %v775 = vsub.f32 %v492, %v774
  %776 = vmatpush1.msra.mxu0 %v775
  %777 = vmatprep.subr.mxu0 0.0
  %v778 = vand.u32 %v493, 4294901760
  %v779 = vsub.f32 %v493, %v778
  %780 = vmatpush1.msra.mxu0 %v779
  %781 = vmatprep.subr.mxu0 0.0
  %v782 = vand.u32 %v494, 4294901760
  %v783 = vsub.f32 %v494, %v782
  %784 = vmatpush1.msra.mxu0 %v783
  %785 = vmatprep.subr.mxu0 0.0
  %v786 = vand.u32 %v495, 4294901760
  %v787 = vsub.f32 %v495, %v786
  %788 = vmatpush1.msra.mxu0 %v787
  %789 = vmatprep.subr.mxu0 0.0
  %v790 = vand.u32 %v496, 4294901760
  %v791 = vsub.f32 %v496, %v790
  %792 = vmatpush1.msra.mxu0 %v791
  %793 = vmatprep.subr.mxu0 0.0
  %v794 = vand.u32 %v497, 4294901760
  %v795 = vsub.f32 %v497, %v794
  %796 = vmatpush1.msra.mxu0 %v795
  %797 = vmatprep.subr.mxu0 0.0
  %v798 = vand.u32 %v498, 4294901760
  %v799 = vsub.f32 %v498, %v798
  %800 = vmatpush1.msra.mxu0 %v799
  %801 = vmatprep.subr.mxu0 0.0
  %v802 = vand.u32 %v499, 4294901760
  %v803 = vsub.f32 %v499, %v802
  %804 = vmatpush1.msra.mxu0 %v803
  %805 = vmatprep.subr.mxu0 0.0
  %v806 = vand.u32 %v500, 4294901760
  %v807 = vsub.f32 %v500, %v806
  %808 = vmatpush1.msra.mxu0 %v807
  %809 = vmatprep.subr.mxu0 0.0
  %810 = vmatpush1.msra.mxu0 0.0
  %811 = vmatprep.subr.mxu0 0.0
  %812 = vmatpush1.msra.mxu0 0.0
  %813 = vmatprep.subr.mxu0 0.0
  %814 = vmatpush1.msra.mxu0 0.0
  %815 = vmatprep.subr.mxu0 0.0
  %816 = vmatpush1.msra.mxu0 0.0
  %817 = vmatprep.subr.mxu0 0.0
  %818 = vmatpush1.msra.mxu0 0.0
  %819 = vmatprep.subr.mxu0 0.0
  %820 = vmatpush1.msra.mxu0 0.0
  %821 = vmatprep.subr.mxu0 0.0
  %822 = vmatpush1.msra.mxu0 0.0
  %823 = vmatprep.subr.mxu0 0.0
  %824 = vmatpush1.msra.mxu0 0.0
  %825 = vmatprep.subr.mxu0 0.0
  %826 = vmatpush1.msra.mxu0 0.0
  %827 = vmatprep.subr.mxu0 0.0
  %828 = vmatpush1.msra.mxu0 0.0
  %829 = vmatprep.subr.mxu0 0.0
  %830 = vmatpush1.msra.mxu0 0.0
  %831 = vmatprep.subr.mxu0 0.0
  %832 = vmatpush1.msra.mxu0 0.0
  %833 = vmatprep.subr.mxu0 0.0
  %834 = vmatpush1.msra.mxu0 0.0
  %835 = vmatprep.subr.mxu0 0.0
  %836 = vmatpush1.msra.mxu0 0.0
  %837 = vmatprep.subr.mxu0 0.0
  %838 = vmatpush1.msra.mxu0 0.0
  %839 = vmatprep.subr.mxu0 0.0
  %840 = vmatpush1.msra.mxu0 0.0
  %841 = vmatprep.mubr.f32.mxu0 0.0
  %v842 = vand.u32 %v484, 4294901760
  %v843 = vsub.f32 %v484, %v842
  %844 = vmatmul.mubr.f32.gmra.mrb[0].mxu0 %v843
  %v845 = vpop.f32.mrb[0].mxu0
  %v846 = vadd.f32 %v742, %v845
  %v847 = vpop.f32.mrb[0].mxu0
  %848 = vdwg.mxu0
  %849 = vmatprep.subr.mxu0 0.0
  %v850 = vand.u32 %v485, 4294901760
  %851 = vmatpush1.msra.mxu0 %v850
  %852 = vmatprep.subr.mxu0 0.0
  %v853 = vand.u32 %v486, 4294901760
  %854 = vmatpush1.msra.mxu0 %v853
  %855 = vmatprep.subr.mxu0 0.0
  %v856 = vand.u32 %v487, 4294901760
  %857 = vmatpush1.msra.mxu0 %v856
  %858 = vmatprep.subr.mxu0 0.0
  %v859 = vand.u32 %v488, 4294901760
  %860 = vmatpush1.msra.mxu0 %v859
  %861 = vmatprep.subr.mxu0 0.0
  %v862 = vand.u32 %v489, 4294901760
  %863 = vmatpush1.msra.mxu0 %v862
  %864 = vmatprep.subr.mxu0 0.0
  %v865 = vand.u32 %v490, 4294901760
  %866 = vmatpush1.msra.mxu0 %v865
  %867 = vmatprep.subr.mxu0 0.0
  %v868 = vand.u32 %v491, 4294901760
  %869 = vmatpush1.msra.mxu0 %v868
  %870 = vmatprep.subr.mxu0 0.0
  %v871 = vand.u32 %v492, 4294901760
  %872 = vmatpush1.msra.mxu0 %v871
  %873 = vmatprep.subr.mxu0 0.0
  %v874 = vand.u32 %v493, 4294901760
  %875 = vmatpush1.msra.mxu0 %v874
  %876 = vmatprep.subr.mxu0 0.0
  %v877 = vand.u32 %v494, 4294901760
  %878 = vmatpush1.msra.mxu0 %v877
  %879 = vmatprep.subr.mxu0 0.0
  %v880 = vand.u32 %v495, 4294901760
  %881 = vmatpush1.msra.mxu0 %v880
  %882 = vmatprep.subr.mxu0 0.0
  %v883 = vand.u32 %v496, 4294901760
  %884 = vmatpush1.msra.mxu0 %v883
  %885 = vmatprep.subr.mxu0 0.0
  %v886 = vand.u32 %v497, 4294901760
  %887 = vmatpush1.msra.mxu0 %v886
  %888 = vmatprep.subr.mxu0 0.0
  %v889 = vand.u32 %v498, 4294901760
  %890 = vmatpush1.msra.mxu0 %v889
  %891 = vmatprep.subr.mxu0 0.0
  %v892 = vand.u32 %v499, 4294901760
  %893 = vmatpush1.msra.mxu0 %v892
  %894 = vmatprep.subr.mxu0 0.0
  %v895 = vand.u32 %v500, 4294901760
  %896 = vmatpush1.msra.mxu0 %v895
  %897 = vmatprep.subr.mxu0 0.0
  %898 = vmatpush1.msra.mxu0 0.0
  %899 = vmatprep.subr.mxu0 0.0
  %900 = vmatpush1.msra.mxu0 0.0
  %901 = vmatprep.subr.mxu0 0.0
  %902 = vmatpush1.msra.mxu0 0.0
  %903 = vmatprep.subr.mxu0 0.0
  %904 = vmatpush1.msra.mxu0 0.0
  %905 = vmatprep.subr.mxu0 0.0
  %906 = vmatpush1.msra.mxu0 0.0
  %907 = vmatprep.subr.mxu0 0.0
  %908 = vmatpush1.msra.mxu0 0.0
  %909 = vmatprep.subr.mxu0 0.0
  %910 = vmatpush1.msra.mxu0 0.0
  %911 = vmatprep.subr.mxu0 0.0
  %912 = vmatpush1.msra.mxu0 0.0
  %913 = vmatprep.subr.mxu0 0.0
  %914 = vmatpush1.msra.mxu0 0.0
  %915 = vmatprep.subr.mxu0 0.0
  %916 = vmatpush1.msra.mxu0 0.0
  %917 = vmatprep.subr.mxu0 0.0
  %918 = vmatpush1.msra.mxu0 0.0
  %919 = vmatprep.subr.mxu0 0.0
  %920 = vmatpush1.msra.mxu0 0.0
  %921 = vmatprep.subr.mxu0 0.0
  %922 = vmatpush1.msra.mxu0 0.0
  %923 = vmatprep.subr.mxu0 0.0
  %924 = vmatpush1.msra.mxu0 0.0
  %925 = vmatprep.subr.mxu0 0.0
  %926 = vmatpush1.msra.mxu0 0.0
  %927 = vmatprep.subr.mxu0 0.0
  %928 = vmatpush1.msra.mxu0 0.0
  %929 = vmatprep.mubr.f32.mxu0 0.0
  %v930 = vand.u32 %v484, 4294901760
  %v931 = vsub.f32 %v484, %v930
  %v932 = vand.u32 %v931, 4294901760
  %933 = vmatmul.mubr.f32.gmra.mrb[0].mxu0 %v932
  %v934 = vpop.f32.mrb[0].mxu0
  %v935 = vadd.f32 %v846, %v934
  %v936 = vpop.f32.mrb[0].mxu0
  %937 = vdwg.mxu0
  %938 = vmatprep.subr.mxu0 0.0
  %v939 = vand.u32 %v485, 4294901760
  %v940 = vsub.f32 %v485, %v939
  %v941 = vand.u32 %v940, 4294901760
  %942 = vmatpush1.msra.mxu0 %v941
  %943 = vmatprep.subr.mxu0 0.0
  %v944 = vand.u32 %v486, 4294901760
  %v945 = vsub.f32 %v486, %v944
  %v946 = vand.u32 %v945, 4294901760
  %947 = vmatpush1.msra.mxu0 %v946
  %948 = vmatprep.subr.mxu0 0.0
  %v949 = vand.u32 %v487, 4294901760
  %v950 = vsub.f32 %v487, %v949
  %v951 = vand.u32 %v950, 4294901760
  %952 = vmatpush1.msra.mxu0 %v951
  %953 = vmatprep.subr.mxu0 0.0
  %v954 = vand.u32 %v488, 4294901760
  %v955 = vsub.f32 %v488, %v954
  %v956 = vand.u32 %v955, 4294901760
  %957 = vmatpush1.msra.mxu0 %v956
  %958 = vmatprep.subr.mxu0 0.0
  %v959 = vand.u32 %v489, 4294901760
  %v960 = vsub.f32 %v489, %v959
  %v961 = vand.u32 %v960, 4294901760
  %962 = vmatpush1.msra.mxu0 %v961
  %963 = vmatprep.subr.mxu0 0.0
  %v964 = vand.u32 %v490, 4294901760
  %v965 = vsub.f32 %v490, %v964
  %v966 = vand.u32 %v965, 4294901760
  %967 = vmatpush1.msra.mxu0 %v966
  %968 = vmatprep.subr.mxu0 0.0
  %v969 = vand.u32 %v491, 4294901760
  %v970 = vsub.f32 %v491, %v969
  %v971 = vand.u32 %v970, 4294901760
  %972 = vmatpush1.msra.mxu0 %v971
  %973 = vmatprep.subr.mxu0 0.0
  %v974 = vand.u32 %v492, 4294901760
  %v975 = vsub.f32 %v492, %v974
  %v976 = vand.u32 %v975, 4294901760
  %977 = vmatpush1.msra.mxu0 %v976
  %978 = vmatprep.subr.mxu0 0.0
  %v979 = vand.u32 %v493, 4294901760
  %v980 = vsub.f32 %v493, %v979
  %v981 = vand.u32 %v980, 4294901760
  %982 = vmatpush1.msra.mxu0 %v981
  %983 = vmatprep.subr.mxu0 0.0
  %v984 = vand.u32 %v494, 4294901760
  %v985 = vsub.f32 %v494, %v984
  %v986 = vand.u32 %v985, 4294901760
  %987 = vmatpush1.msra.mxu0 %v986
  %988 = vmatprep.subr.mxu0 0.0
  %v989 = vand.u32 %v495, 4294901760
  %v990 = vsub.f32 %v495, %v989
  %v991 = vand.u32 %v990, 4294901760
  %992 = vmatpush1.msra.mxu0 %v991
  %993 = vmatprep.subr.mxu0 0.0
  %v994 = vand.u32 %v496, 4294901760
  %v995 = vsub.f32 %v496, %v994
  %v996 = vand.u32 %v995, 4294901760
  %997 = vmatpush1.msra.mxu0 %v996
  %998 = vmatprep.subr.mxu0 0.0
  %v999 = vand.u32 %v497, 4294901760
  %v1000 = vsub.f32 %v497, %v999
  %v1001 = vand.u32 %v1000, 4294901760
  %1002 = vmatpush1.msra.mxu0 %v1001
  %1003 = vmatprep.subr.mxu0 0.0
  %v1004 = vand.u32 %v498, 4294901760
  %v1005 = vsub.f32 %v498, %v1004
  %v1006 = vand.u32 %v1005, 4294901760
  %1007 = vmatpush1.msra.mxu0 %v1006
  %1008 = vmatprep.subr.mxu0 0.0
  %v1009 = vand.u32 %v499, 4294901760
  %v1010 = vsub.f32 %v499, %v1009
  %v1011 = vand.u32 %v1010, 4294901760
  %1012 = vmatpush1.msra.mxu0 %v1011
  %1013 = vmatprep.subr.mxu0 0.0
  %v1014 = vand.u32 %v500, 4294901760
  %v1015 = vsub.f32 %v500, %v1014
  %v1016 = vand.u32 %v1015, 4294901760
  %1017 = vmatpush1.msra.mxu0 %v1016
  %1018 = vmatprep.subr.mxu0 0.0
  %1019 = vmatpush1.msra.mxu0 0.0
  %1020 = vmatprep.subr.mxu0 0.0
  %1021 = vmatpush1.msra.mxu0 0.0
  %1022 = vmatprep.subr.mxu0 0.0
  %1023 = vmatpush1.msra.mxu0 0.0
  %1024 = vmatprep.subr.mxu0 0.0
  %1025 = vmatpush1.msra.mxu0 0.0
  %1026 = vmatprep.subr.mxu0 0.0
  %1027 = vmatpush1.msra.mxu0 0.0
  %1028 = vmatprep.subr.mxu0 0.0
  %1029 = vmatpush1.msra.mxu0 0.0
  %1030 = vmatprep.subr.mxu0 0.0
  %1031 = vmatpush1.msra.mxu0 0.0
  %1032 = vmatprep.subr.mxu0 0.0
  %1033 = vmatpush1.msra.mxu0 0.0
  %1034 = vmatprep.subr.mxu0 0.0
  %1035 = vmatpush1.msra.mxu0 0.0
  %1036 = vmatprep.subr.mxu0 0.0
  %1037 = vmatpush1.msra.mxu0 0.0
  %1038 = vmatprep.subr.mxu0 0.0
  %1039 = vmatpush1.msra.mxu0 0.0
  %1040 = vmatprep.subr.mxu0 0.0
  %1041 = vmatpush1.msra.mxu0 0.0
  %1042 = vmatprep.subr.mxu0 0.0
  %1043 = vmatpush1.msra.mxu0 0.0
  %1044 = vmatprep.subr.mxu0 0.0
  %1045 = vmatpush1.msra.mxu0 0.0
  %1046 = vmatprep.subr.mxu0 0.0
  %1047 = vmatpush1.msra.mxu0 0.0
  %1048 = vmatprep.subr.mxu0 0.0
  %1049 = vmatpush1.msra.mxu0 0.0
  %1050 = vmatprep.mubr.f32.mxu0 0.0
  %v1051 = vand.u32 %v484, 4294901760
  %1052 = vmatmul.mubr.f32.gmra.mrb[0].mxu0 %v1051
  %v1053 = vpop.f32.mrb[0].mxu0
  %v1054 = vadd.f32 %v935, %v1053
  %v1055 = vpop.f32.mrb[0].mxu0
  %1056 = vdwg.mxu0
  %1057 = vmatprep.subr.mxu0 0.0
  %v1058 = vand.u32 %v485, 4294901760
  %1059 = vmatpush1.msra.mxu0 %v1058
  %1060 = vmatprep.subr.mxu0 0.0
  %v1061 = vand.u32 %v486, 4294901760
  %1062 = vmatpush1.msra.mxu0 %v1061
  %1063 = vmatprep.subr.mxu0 0.0
  %v1064 = vand.u32 %v487, 4294901760
  %1065 = vmatpush1.msra.mxu0 %v1064
  %1066 = vmatprep.subr.mxu0 0.0
  %v1067 = vand.u32 %v488, 4294901760
  %1068 = vmatpush1.msra.mxu0 %v1067
  %1069 = vmatprep.subr.mxu0 0.0
  %v1070 = vand.u32 %v489, 4294901760
  %1071 = vmatpush1.msra.mxu0 %v1070
  %1072 = vmatprep.subr.mxu0 0.0
  %v1073 = vand.u32 %v490, 4294901760
  %1074 = vmatpush1.msra.mxu0 %v1073
  %1075 = vmatprep.subr.mxu0 0.0
  %v1076 = vand.u32 %v491, 4294901760
  %1077 = vmatpush1.msra.mxu0 %v1076
  %1078 = vmatprep.subr.mxu0 0.0
  %v1079 = vand.u32 %v492, 4294901760
  %1080 = vmatpush1.msra.mxu0 %v1079
  %1081 = vmatprep.subr.mxu0 0.0
  %v1082 = vand.u32 %v493, 4294901760
  %1083 = vmatpush1.msra.mxu0 %v1082
  %1084 = vmatprep.subr.mxu0 0.0
  %v1085 = vand.u32 %v494, 4294901760
  %1086 = vmatpush1.msra.mxu0 %v1085
  %1087 = vmatprep.subr.mxu0 0.0
  %v1088 = vand.u32 %v495, 4294901760
  %1089 = vmatpush1.msra.mxu0 %v1088
  %1090 = vmatprep.subr.mxu0 0.0
  %v1091 = vand.u32 %v496, 4294901760
  %1092 = vmatpush1.msra.mxu0 %v1091
  %1093 = vmatprep.subr.mxu0 0.0
  %v1094 = vand.u32 %v497, 4294901760
  %1095 = vmatpush1.msra.mxu0 %v1094
  %1096 = vmatprep.subr.mxu0 0.0
  %v1097 = vand.u32 %v498, 4294901760
  %1098 = vmatpush1.msra.mxu0 %v1097
  %1099 = vmatprep.subr.mxu0 0.0
  %v1100 = vand.u32 %v499, 4294901760
  %1101 = vmatpush1.msra.mxu0 %v1100
  %1102 = vmatprep.subr.mxu0 0.0
  %v1103 = vand.u32 %v500, 4294901760
  %1104 = vmatpush1.msra.mxu0 %v1103
  %1105 = vmatprep.subr.mxu0 0.0
  %1106 = vmatpush1.msra.mxu0 0.0
  %1107 = vmatprep.subr.mxu0 0.0
  %1108 = vmatpush1.msra.mxu0 0.0
  %1109 = vmatprep.subr.mxu0 0.0
  %1110 = vmatpush1.msra.mxu0 0.0
  %1111 = vmatprep.subr.mxu0 0.0
  %1112 = vmatpush1.msra.mxu0 0.0
  %1113 = vmatprep.subr.mxu0 0.0
  %1114 = vmatpush1.msra.mxu0 0.0
  %1115 = vmatprep.subr.mxu0 0.0
  %1116 = vmatpush1.msra.mxu0 0.0
  %1117 = vmatprep.subr.mxu0 0.0
  %1118 = vmatpush1.msra.mxu0 0.0
  %1119 = vmatprep.subr.mxu0 0.0
  %1120 = vmatpush1.msra.mxu0 0.0
  %1121 = vmatprep.subr.mxu0 0.0
  %1122 = vmatpush1.msra.mxu0 0.0
  %1123 = vmatprep.subr.mxu0 0.0
  %1124 = vmatpush1.msra.mxu0 0.0
  %1125 = vmatprep.subr.mxu0 0.0
  %1126 = vmatpush1.msra.mxu0 0.0
  %1127 = vmatprep.subr.mxu0 0.0
  %1128 = vmatpush1.msra.mxu0 0.0
  %1129 = vmatprep.subr.mxu0 0.0
  %1130 = vmatpush1.msra.mxu0 0.0
  %1131 = vmatprep.subr.mxu0 0.0
  %1132 = vmatpush1.msra.mxu0 0.0
  %1133 = vmatprep.subr.mxu0 0.0
  %1134 = vmatpush1.msra.mxu0 0.0
  %1135 = vmatprep.subr.mxu0 0.0
  %1136 = vmatpush1.msra.mxu0 0.0
  %1137 = vmatprep.mubr.f32.mxu0 0.0
  %v1138 = vand.u32 %v484, 4294901760
  %1139 = vmatmul.mubr.f32.gmra.mrb[0].mxu0 %v1138
  %v1140 = vpop.f32.mrb[0].mxu0
  %v1141 = vadd.f32 %v1054, %v1140
  %v1142 = vpop.f32.mrb[0].mxu0
  %1143 = vdwg.mxu0
  %v1144 = vand.u32 2147483647, %v1141
  %v1145 = vsub.f32 0.0, %v1144
  %v1146 = vmul.f32 %v1145, 1.442695
  %v1147 = vpow.pop %v1146
  %v1148 = vadd.f32 %v1147, 1.0
  %v1149 = vrcp.pop %v1148
  %v1150 = vmul.f32 1.0, %v1149
  %v1151 = vmul.f32 %v1147, %v1150
  %vm1152 = vcmp.ge.f32.partialorder %v1141, 0.0
  %v1153 = vsel %vm1152, %v1150, %v1151
  %v1154 = vsel %vm1152, %v1151, %v1150
  %v1155 = vlaneseq
  %v1156 = vand.u32 %v1155, 127
  %vm1157 = vcmp.eq.s32.totalorder %v1156, 0
  %1159 = vset.pattern.permute.xlu0 0
  %1160 = vperm.xlu0 %1159, %v1153
  %v1161 = vpop.permute.xlu0 %1160
  %1164 = vset.pattern.permute.xlu0 0
  %1165 = vperm.xlu0 %1164, %v1154
  %v1166 = vpop.permute.xlu0 %1165
  %v1168 = vsel %vm1157, %v1161, %v1166
  %vm1169 = vcmask 15360
  %1170 = vst.msk [vmem:[%s5] sm:$0xff] %vm1169, %v1168
  // Predicated region
  $region22: #{tpu_custom_call.1} parent=0 // pred_check
    _
  $region23: #{tpu_custom_call.1} parent=0 // pred_check_branch
    %1172 = sbr.rel (0) target = $region25
  $region24: #{tpu_custom_call.1} parent=0 // pred_region
    _
  $region25: #{tpu_custom_call.1} parent=0 // pred_fallthru
    _
  // Predicated region
  $region26: #{tpu_custom_call.1} parent=0 // pred_check
    _
  $region27: #{tpu_custom_call.1} parent=0 // pred_check_branch
    %1174 = sbr.rel (0) target = $region29
  $region28: #{tpu_custom_call.1} parent=0 // pred_region
    _
  $region29: #{tpu_custom_call.1} parent=0 // pred_fallthru
    _

</llo_original>
